<compile_context>
chip_gen: v6e
topology: v6e:2x2x1
jax: 0.10.0
libtpu: 0.0.40
codegen_flags: <defaults>
</compile_context>

<pallas_src>
import functools

import numpy as np
import jax
import jax.numpy as jnp
from jax.experimental import pallas as pl
from jax.experimental.pallas import tpu as pltpu

THETA = 1.0  # GumbelPhi(torch.tensor(1.0)) default


def _round_up(x, m):
    return ((x + m - 1) // m) * m


def _stdf_pickands_kernel(yt_ref, w_ref, a_ref, acc_ref, *,
                          n_valid, u_times_n, inv_theta, need_mask):
    """Grid = (batch tiles, n tiles); n is the trailing reduction axis.

    yt_ref : (d, TN)  y^T tile -- samples on lanes, margins on sublanes
    w_ref  : (TB, d)  weight rows for this batch tile (resident across n)
    a_ref  : (TB, 1)  Pickands estimate, written on the last n step
    acc_ref: (TB, 1)  VMEM running sum of x over n
    """
    ni = pl.program_id(1)

    @pl.when(ni == 0)
    def _init():
        acc_ref[...] = jnp.zeros_like(acc_ref)

    yt = yt_ref[...]                                   # (d, TN)
    if inv_theta == 1.0:
        z = jnp.exp(-yt)                               # single EUP op / element
    else:
        # s**(1/theta) written explicitly as exp(log(s) / theta)
        z = jnp.exp(-jnp.exp(inv_theta * jnp.log(yt)))

    # B*d reciprocals instead of B*n*d divides.
    inv_w = pl.reciprocal(w_ref[...], approx=False)    # (TB, d)

    d = yt.shape[0]
    # Running minimum over margins: x[b, i] = min_j z[j, i] * inv_w[b, j].
    # Pure VPU, lane-dense in n; the (B, n, d) tensor is never materialized.
    x = z[0:1, :] * inv_w[:, 0:1]                      # (TB, TN)
    for j in range(1, d):
        x = jnp.minimum(x, z[j:j + 1, :] * inv_w[:, j:j + 1])

    if need_mask:  # zero padded sample lanes so they don't bias the mean
        tb, tn = x.shape
        lane = ni * tn + jax.lax.broadcasted_iota(jnp.int32, (tb, tn), 1)
        x = jnp.where(lane < n_valid, x, 0.0)

    acc_ref[...] += jnp.sum(x, axis=1, keepdims=True)  # (TB, 1)

    @pl.when(ni == pl.num_programs(1) - 1)
    def _finalize():
        # A = u / mean_i x = (u * n) / sum_i x
        a_ref[...] = (u_times_n / acc_ref[...]).astype(a_ref.dtype)


def stdf_pickands(y, w, theta=THETA):
    """y: (n, d), w: (B, d) -> A: (B,) float32."""
    y = jnp.asarray(y, jnp.float32)
    w = jnp.asarray(w, jnp.float32)
    n, d = y.shape
    b = w.shape[0]

    # u depends only on the static sample count n -> pure host math (numpy).
    ranks = np.arange(1, n + 1, dtype=np.float64) / float(n + 1)
    u = float(np.mean(np.exp(-(ranks ** (1.0 / theta)))))

    # Tile sizes: samples lane-dense (multiple of 128), batch rows on sublanes
    # (multiple of 8).  Small tiles -> fits default scoped VMEM everywhere,
    # including v7x's 64 MiB VMEM per TensorCore.
    n128 = _round_up(n, 128)
    tn = n128 if n128 <= 1024 else 512
    n_pad = _round_up(n, tn)
    if b <= 128:
        tb = _round_up(b, 8)
        b_pad = tb
    else:
        tb = 128
        b_pad = _round_up(b, tb)

    # Layout plumbing in the wrapper (y is a fixed "parameter" of the module):
    # present it as (d, n) so n sits on the lane axis inside the kernel.
    yt = y.T
    if n_pad != n:
        yt = jnp.pad(yt, ((0, 0), (0, n_pad - n)), constant_values=1.0)
    if b_pad != b:
        w = jnp.pad(w, ((0, b_pad - b), (0, 0)), constant_values=1.0)

    kernel = functools.partial(
        _stdf_pickands_kernel,
        n_valid=n, u_times_n=u * n, inv_theta=1.0 / theta,
        need_mask=(n_pad != n))

    out = pl.pallas_call(
        kernel,
        out_shape=jax.ShapeDtypeStruct((b_pad, 1), jnp.float32),
        grid=(b_pad // tb, n_pad // tn),
        in_specs=[
            pl.BlockSpec((d, tn), lambda bi, ni: (0, ni)),   # stream n slabs of y^T
            pl.BlockSpec((tb, d), lambda bi, ni: (bi, 0)),   # w tile, resident over n
        ],
        out_specs=pl.BlockSpec((tb, 1), lambda bi, ni: (bi, 0)),
        scratch_shapes=[pltpu.VMEM((tb, 1), jnp.float32)],
        compiler_params=pltpu.CompilerParams(
            dimension_semantics=("parallel", "arbitrary")),
    )(yt, w)
    return out[:b, 0]


def stdf_pickands_ref(y, w, theta=THETA):
    """Pure-JAX reference mirroring the PyTorch forward exactly."""
    n = y.shape[0]
    z_t = jnp.exp(-(y.T ** (1.0 / theta)))                     # (d, n)
    ratio = z_t[None, :, :] / w[:, :, None]                    # (B, d, n)
    x = jnp.min(ratio, axis=1)                                 # (B, n)
    u = jnp.mean(jnp.exp(-((jnp.arange(1, n + 1, dtype=jnp.float32)
                            / (n + 1)) ** (1.0 / theta))))
    return u / jnp.mean(x, axis=1)                             # (B,)


if __name__ == "__main__":
    key = jax.random.PRNGKey(0)
    ky, kw = jax.random.split(key)

    n, d, batch = 16, 8, 4                    # ndims = y.shape[0] = 16
    # y, w strictly positive (copula / weight scale), deterministic from PRNGKey(0)
    y = jax.random.uniform(ky, (n, d), dtype=jnp.float32, minval=0.05, maxval=1.0)
    w = jax.random.uniform(kw, (batch, d), dtype=jnp.float32, minval=0.1, maxval=1.0)

    a = stdf_pickands(y, w)
    jax.block_until_ready(a)

    a_ref = stdf_pickands_ref(y, w)
    assert a.shape == (batch,)
    assert jnp.allclose(a, a_ref, rtol=1e-5, atol=1e-5), (a, a_ref)

    print("KERNEL_OK")
</pallas_src>

<mosaic_0001>
module attributes {stable_mosaic.version = 11 : i64} {
  func.func @_stdf_pickands_kernel(%arg0: i32, %arg1: i32, %arg2: memref<8x128xf32, #tpu.memory_space<vmem>>, %arg3: memref<8x8xf32, #tpu.memory_space<vmem>>, %arg4: memref<8x1xf32, #tpu.memory_space<vmem>>, %arg5: memref<8x1xf32, #tpu.memory_space<vmem>>) attributes {dimension_semantics = [#tpu.dimension_semantics<parallel>, #tpu.dimension_semantics<arbitrary>], iteration_bounds = array<i64: 1, 1>, scalar_prefetch = 0 : i64, scratch_operands = 1 : i64, tpu.core_type = #tpu.core_type<tc>, window_params = [{transform_indices = @transform_0, window_bounds = array<i64: 8, 128>}, {transform_indices = @transform_1, window_bounds = array<i64: 8, 8>}, {transform_indices = @transform_2, window_bounds = array<i64: 8, 1>}]} {
    %c0_i32 = arith.constant 0 : i32
    %0 = arith.cmpi eq, %arg1, %c0_i32 : i32
    %1 = arith.extui %0 : i1 to i32
    %c0_i32_0 = arith.constant 0 : i32
    %2 = arith.cmpi ne, %1, %c0_i32_0 : i32
    scf.if %2 {
      %cst_12 = arith.constant 0.000000e+00 : f32
      %72 = vector.broadcast %cst_12 : f32 to vector<8x1xf32>
      %c0_13 = arith.constant 0 : index
      %c0_14 = arith.constant 0 : index
      %73 = vector.load %arg5[%c0_13, %c0_14] : memref<8x1xf32, #tpu.memory_space<vmem>>, vector<8x1xf32>
      tpu.vector_store %arg5[%c0_13, %c0_14], %72 {strides = array<i32>} : memref<8x1xf32, #tpu.memory_space<vmem>>, vector<8x1xf32>,
    } else {
    }
    %c0 = arith.constant 0 : index
    %c0_1 = arith.constant 0 : index
    %3 = vector.load %arg2[%c0, %c0_1] : memref<8x128xf32, #tpu.memory_space<vmem>>, vector<8x128xf32>
    %cst = arith.constant 0.000000e+00 : f32
    %4 = vector.broadcast %cst : f32 to vector<8x128xf32>
    %5 = arith.subf %4, %3 : vector<8x128xf32>
    %6 = math.exp %5 : vector<8x128xf32>
    %c0_2 = arith.constant 0 : index
    %c0_3 = arith.constant 0 : index
    %7 = vector.load %arg3[%c0_2, %c0_3] : memref<8x8xf32, #tpu.memory_space<vmem>>, vector<8x8xf32>
    %8 = tpu.reciprocal %7 : vector<8x8xf32> -> vector<8x8xf32>
    %9 = vector.extract_strided_slice %6 {offsets = [0, 0], sizes = [1, 128], strides = [1, 1]} : vector<8x128xf32> to vector<1x128xf32>
    %10 = vector.extract_strided_slice %8 {offsets = [0, 0], sizes = [8, 1], strides = [1, 1]} : vector<8x8xf32> to vector<8x1xf32>
    %11 = vector.broadcast %9 : vector<1x128xf32> to vector<8x128xf32>
    %12 = vector.broadcast %10 : vector<8x1xf32> to vector<8x128xf32>
    %13 = arith.mulf %11, %12 : vector<8x128xf32>
    %14 = vector.extract_strided_slice %6 {offsets = [1, 0], sizes = [1, 128], strides = [1, 1]} : vector<8x128xf32> to vector<1x128xf32>
    %15 = vector.extract_strided_slice %8 {offsets = [0, 1], sizes = [8, 1], strides = [1, 1]} : vector<8x8xf32> to vector<8x1xf32>
    %16 = vector.broadcast %14 : vector<1x128xf32> to vector<8x128xf32>
    %17 = vector.broadcast %15 : vector<8x1xf32> to vector<8x128xf32>
    %18 = arith.mulf %16, %17 : vector<8x128xf32>
    %19 = arith.minimumf %13, %18 : vector<8x128xf32>
    %20 = vector.extract_strided_slice %6 {offsets = [2, 0], sizes = [1, 128], strides = [1, 1]} : vector<8x128xf32> to vector<1x128xf32>
    %21 = vector.extract_strided_slice %8 {offsets = [0, 2], sizes = [8, 1], strides = [1, 1]} : vector<8x8xf32> to vector<8x1xf32>
    %22 = vector.broadcast %20 : vector<1x128xf32> to vector<8x128xf32>
    %23 = vector.broadcast %21 : vector<8x1xf32> to vector<8x128xf32>
    %24 = arith.mulf %22, %23 : vector<8x128xf32>
    %25 = arith.minimumf %19, %24 : vector<8x128xf32>
    %26 = vector.extract_strided_slice %6 {offsets = [3, 0], sizes = [1, 128], strides = [1, 1]} : vector<8x128xf32> to vector<1x128xf32>
    %27 = vector.extract_strided_slice %8 {offsets = [0, 3], sizes = [8, 1], strides = [1, 1]} : vector<8x8xf32> to vector<8x1xf32>
    %28 = vector.broadcast %26 : vector<1x128xf32> to vector<8x128xf32>
    %29 = vector.broadcast %27 : vector<8x1xf32> to vector<8x128xf32>
    %30 = arith.mulf %28, %29 : vector<8x128xf32>
    %31 = arith.minimumf %25, %30 : vector<8x128xf32>
    %32 = vector.extract_strided_slice %6 {offsets = [4, 0], sizes = [1, 128], strides = [1, 1]} : vector<8x128xf32> to vector<1x128xf32>
    %33 = vector.extract_strided_slice %8 {offsets = [0, 4], sizes = [8, 1], strides = [1, 1]} : vector<8x8xf32> to vector<8x1xf32>
    %34 = vector.broadcast %32 : vector<1x128xf32> to vector<8x128xf32>
    %35 = vector.broadcast %33 : vector<8x1xf32> to vector<8x128xf32>
    %36 = arith.mulf %34, %35 : vector<8x128xf32>
    %37 = arith.minimumf %31, %36 : vector<8x128xf32>
    %38 = vector.extract_strided_slice %6 {offsets = [5, 0], sizes = [1, 128], strides = [1, 1]} : vector<8x128xf32> to vector<1x128xf32>
    %39 = vector.extract_strided_slice %8 {offsets = [0, 5], sizes = [8, 1], strides = [1, 1]} : vector<8x8xf32> to vector<8x1xf32>
    %40 = vector.broadcast %38 : vector<1x128xf32> to vector<8x128xf32>
    %41 = vector.broadcast %39 : vector<8x1xf32> to vector<8x128xf32>
    %42 = arith.mulf %40, %41 : vector<8x128xf32>
    %43 = arith.minimumf %37, %42 : vector<8x128xf32>
    %44 = vector.extract_strided_slice %6 {offsets = [6, 0], sizes = [1, 128], strides = [1, 1]} : vector<8x128xf32> to vector<1x128xf32>
    %45 = vector.extract_strided_slice %8 {offsets = [0, 6], sizes = [8, 1], strides = [1, 1]} : vector<8x8xf32> to vector<8x1xf32>
    %46 = vector.broadcast %44 : vector<1x128xf32> to vector<8x128xf32>
    %47 = vector.broadcast %45 : vector<8x1xf32> to vector<8x128xf32>
    %48 = arith.mulf %46, %47 : vector<8x128xf32>
    %49 = arith.minimumf %43, %48 : vector<8x128xf32>
    %50 = vector.extract_strided_slice %6 {offsets = [7, 0], sizes = [1, 128], strides = [1, 1]} : vector<8x128xf32> to vector<1x128xf32>
    %51 = vector.extract_strided_slice %8 {offsets = [0, 7], sizes = [8, 1], strides = [1, 1]} : vector<8x8xf32> to vector<8x1xf32>
    %52 = vector.broadcast %50 : vector<1x128xf32> to vector<8x128xf32>
    %53 = vector.broadcast %51 : vector<8x1xf32> to vector<8x128xf32>
    %54 = arith.mulf %52, %53 : vector<8x128xf32>
    %55 = arith.minimumf %49, %54 : vector<8x128xf32>
    %c128_i32 = arith.constant 128 : i32
    %56 = arith.muli %arg1, %c128_i32 : i32
    %57 = tpu.iota {dimensions = array<i32: 1>} : vector<8x128xi32>
    %58 = vector.broadcast %56 : i32 to vector<8x128xi32>
    %59 = arith.addi %58, %57 : vector<8x128xi32>
    %c16_i32 = arith.constant 16 : i32
    %60 = vector.broadcast %c16_i32 : i32 to vector<8x128xi32>
    %61 = arith.cmpi slt, %59, %60 : vector<8x128xi32>
    %cst_4 = arith.constant 0.000000e+00 : f32
    %62 = vector.broadcast %cst_4 : f32 to vector<8x128xf32>
    %63 = arith.select %61, %55, %62 : vector<8x128xi1>, vector<8x128xf32>
    %c0_5 = arith.constant 0 : index
    %c0_6 = arith.constant 0 : index
    %64 = vector.load %arg5[%c0_5, %c0_6] : memref<8x1xf32, #tpu.memory_space<vmem>>, vector<8x1xf32>
    %cst_7 = arith.constant dense<0.000000e+00> : vector<8xf32>
    %65 = vector.multi_reduction <add>, %63, %cst_7 [1] : vector<8x128xf32> to vector<8xf32>
    %66 = vector.shape_cast %65 : vector<8xf32> to vector<8x1xf32>
    %67 = arith.addf %64, %66 : vector<8x1xf32>
    %c0_8 = arith.constant 0 : index
    %c0_9 = arith.constant 0 : index
    %68 = vector.load %arg5[%c0_8, %c0_9] : memref<8x1xf32, #tpu.memory_space<vmem>>, vector<8x1xf32>
    tpu.vector_store %arg5[%c0_8, %c0_9], %67 {strides = array<i32>} : memref<8x1xf32, #tpu.memory_space<vmem>>, vector<8x1xf32>,
    %c0_i32_10 = arith.constant 0 : i32
    %69 = arith.cmpi eq, %arg1, %c0_i32_10 : i32
    %70 = arith.extui %69 : i1 to i32
    %c0_i32_11 = arith.constant 0 : i32
    %71 = arith.cmpi ne, %70, %c0_i32_11 : i32
    scf.if %71 {
      %c0_12 = arith.constant 0 : index
      %c0_13 = arith.constant 0 : index
      %72 = vector.load %arg5[%c0_12, %c0_13] : memref<8x1xf32, #tpu.memory_space<vmem>>, vector<8x1xf32>
      %cst_14 = arith.constant 10.0652084 : f32
      %73 = vector.broadcast %cst_14 : f32 to vector<8x1xf32>
      %74 = arith.divf %73, %72 : vector<8x1xf32>
      %c0_15 = arith.constant 0 : index
      %c0_16 = arith.constant 0 : index
      %75 = vector.load %arg4[%c0_15, %c0_16] : memref<8x1xf32, #tpu.memory_space<vmem>>, vector<8x1xf32>
      tpu.vector_store %arg4[%c0_15, %c0_16], %74 {strides = array<i32>} : memref<8x1xf32, #tpu.memory_space<vmem>>, vector<8x1xf32>,
    } else {
    }
    return
  }
  func.func @transform_0(%arg0: i32, %arg1: i32) -> (i32, i32) {
    %c0_i32 = arith.constant 0 : i32
    %c0_i32_0 = arith.constant 0 : i32
    return %c0_i32, %arg1 : i32, i32
  }
  func.func @transform_1(%arg0: i32, %arg1: i32) -> (i32, i32) {
    %c0_i32 = arith.constant 0 : i32
    %c0_i32_0 = arith.constant 0 : i32
    return %arg0, %c0_i32 : i32, i32
  }
  func.func @transform_2(%arg0: i32, %arg1: i32) -> (i32, i32) {
    %c0_i32 = arith.constant 0 : i32
    %c0_i32_0 = arith.constant 0 : i32
    return %arg0, %c0_i32 : i32, i32
  }
}

</mosaic_0001>

<llo_original>
// kernel: tpu_custom_call.1
$region0: #{tpu_custom_call.1}
  #allocation0 [shape = 'u32[]', space=smem, size = 0x4, offset = 0x4, fixed_abs, tag = 'smem constant byte address 0x4 - core index']
  #allocation1 [shape = 'u32[144,128]{1,0:T(1,128)}', space=vmem, size = 0x12000, scoped, tag = 'internal scratch']
  #allocation2 [shape = 'f32[8,1]{1,0:T(8,128)}', space=vmem, size = 0x1000, scoped, tag = 'scratch operand']
  %s0 = inlined_call_operand.hbm [shape: f32[8,128], index: 0, kind: input, shape index: {}]
  %s1 = inlined_call_operand.hbm [shape: f32[8,8], index: 1, kind: input, shape index: {}]
  %s2 = inlined_call_operand.vmem [shape: f32[8,1], index: 2, kind: output, shape index: {}]
  %s3 = sld [smem:[#allocation0]]
  $region34: #{tpu_custom_call.1} parent=0
    _
  %s5 = ssub.s32 1, %s3
  %s6 = scalar_select 0, %s5, %s3
  $region1: #{tpu_custom_call.1} parent=0
    #allocation3 [shape = 'u8[4096]{0}', space=vmem, size = 0x1000, scoped, tag = 'input window, operand 0, single buffered']
    #allocation4 [shape = 's32[1]{0}', space=sflag, size = 0x4, scoped, tag = 'scoped memory for tpu_custom_call.1']
    #allocation5 [shape = 'u8[4096]{0}', space=vmem, size = 0x1000, scoped, tag = 'input window, operand 1, single buffered']
    #allocation6 [shape = 's32[1]{0}', space=sflag, size = 0x4, scoped, tag = 'scoped memory for tpu_custom_call.1']
    %7 = vsyncpa [#allocation4], 0
    %8 = vsyncpa [#allocation6], 0
    // Predicated region
    $region2: #{tpu_custom_call.1} parent=1 // pred_check
      _
    $region3: #{tpu_custom_call.1} parent=1 // pred_check_branch
      %10 = sbr.rel (0) target = $region5
    $region4: #{tpu_custom_call.1} parent=1 // pred_region
      %s12 = ssub.s32 128, 128
      %13 = vsyncadd [#allocation4], %s12
      %s15 = sshll.u32 [#allocation3], 4
      %s16 = int_to_ptr.vmem [resolvable:$true] %s15
      %18 = dma.hbm_to_vmem [thread:$0]  %s0, 128, %s16, [#allocation4]
    $region5: #{tpu_custom_call.1} parent=1 // pred_fallthru
      _
    // Predicated region
    $region6: #{tpu_custom_call.1} parent=1 // pred_check
      _
    $region7: #{tpu_custom_call.1} parent=1 // pred_check_branch
      %20 = sbr.rel (0) target = $region9
    $region8: #{tpu_custom_call.1} parent=1 // pred_region
      %s22 = ssub.s32 128, 128
      %23 = vsyncadd [#allocation6], %s22
      %s25 = sshll.u32 [#allocation5], 4
      %s26 = int_to_ptr.vmem [resolvable:$true] %s25
      %28 = dma.hbm_to_vmem [thread:$0]  %s1, 128, %s26, [#allocation6]
    $region9: #{tpu_custom_call.1} parent=1 // pred_fallthru
      _
    // Predicated region
    $region10: #{tpu_custom_call.1} parent=1 // pred_check
      _
    $region11: #{tpu_custom_call.1} parent=1 // pred_check_branch
      %30 = sbr.rel (0) target = $region13
    $region12: #{tpu_custom_call.1} parent=1 // pred_region
      %31 = dma.done [#allocation4], 128
    $region13: #{tpu_custom_call.1} parent=1 // pred_fallthru
      _
    // Predicated region
    $region14: #{tpu_custom_call.1} parent=1 // pred_check
      _
    $region15: #{tpu_custom_call.1} parent=1 // pred_check_branch
      %33 = sbr.rel (0) target = $region17
    $region16: #{tpu_custom_call.1} parent=1 // pred_region
      %34 = dma.done [#allocation6], 128
    $region17: #{tpu_custom_call.1} parent=1 // pred_fallthru
      _
    %p35 = scmp.eq.s32.totalorder 0, 0
    // Predicated region
    $region18: #{tpu_custom_call.1} parent=1 // pred_check
      %p36 = pneg %p35
    $region19: #{tpu_custom_call.1} parent=1 // pred_check_branch
      %38 = sbr.rel (%p36) target = $region21
    $region20: #{tpu_custom_call.1} parent=1 // pred_region
      %vm39 = vcmask 7168
      %40 = vst.msk [vmem:[#allocation2] sm:$0xff] %vm39, 0.0
    $region21: #{tpu_custom_call.1} parent=1 // pred_fallthru
      _
    %v41 = vld [vmem:[#allocation3] sm:$0xff]
    %v42 = vsub.f32 0.0, %v41
    %v43 = vmul.f32 %v42, 1.442695
    %v44 = vpow.pop %v43
    %v45 = vld [vmem:[#allocation5] sm:$0xff]
    %v46 = vrcp.pop %v45
    %v47 = vlaneseq
    %v48 = vshrl.u32 %v47, 7
    %v49 = vsub.s32 0, %v48
    %v50 = vrot.slane %v44, %v49
    %52 = vset.pattern.permute.xlu0 0
    %53 = vperm.xlu0 %52, %v46
    %v54 = vpop.permute.xlu0 %53
    %v56 = vmul.f32 %v50, %v54
    %v57 = vlaneseq
    %v58 = vshrl.u32 %v57, 7
    %v59 = vsub.s32 1, %v58
    %v60 = vrot.slane %v44, %v59
    %61 = vset.pattern.permute.xlu0 1
    %62 = vperm.xlu0 %61, %v46
    %v63 = vpop.permute.xlu0 %62
    %v65 = vmul.f32 %v60, %v63
    %v66 = vmin.f32 %v56, %v65
    %v67 = vlaneseq
    %v68 = vshrl.u32 %v67, 7
    %v69 = vsub.s32 2, %v68
    %v70 = vrot.slane %v44, %v69
    %71 = vset.pattern.permute.xlu0 2
    %72 = vperm.xlu0 %71, %v46
    %v73 = vpop.permute.xlu0 %72
    %v75 = vmul.f32 %v70, %v73
    %v76 = vmin.f32 %v66, %v75
    %v77 = vlaneseq
    %v78 = vshrl.u32 %v77, 7
    %v79 = vsub.s32 3, %v78
    %v80 = vrot.slane %v44, %v79
    %81 = vset.pattern.permute.xlu0 3
    %82 = vperm.xlu0 %81, %v46
    %v83 = vpop.permute.xlu0 %82
    %v85 = vmul.f32 %v80, %v83
    %v86 = vmin.f32 %v76, %v85
    %v87 = vlaneseq
    %v88 = vshrl.u32 %v87, 7
    %v89 = vsub.s32 4, %v88
    %v90 = vrot.slane %v44, %v89
    %91 = vset.pattern.permute.xlu0 4
    %92 = vperm.xlu0 %91, %v46
    %v93 = vpop.permute.xlu0 %92
    %v95 = vmul.f32 %v90, %v93
    %v96 = vmin.f32 %v86, %v95
    %v97 = vlaneseq
    %v98 = vshrl.u32 %v97, 7
    %v99 = vsub.s32 5, %v98
    %v100 = vrot.slane %v44, %v99
    %101 = vset.pattern.permute.xlu0 5
    %102 = vperm.xlu0 %101, %v46
    %v103 = vpop.permute.xlu0 %102
    %v105 = vmul.f32 %v100, %v103
    %v106 = vmin.f32 %v96, %v105
    %v107 = vlaneseq
    %v108 = vshrl.u32 %v107, 7
    %v109 = vsub.s32 6, %v108
    %v110 = vrot.slane %v44, %v109
    %111 = vset.pattern.permute.xlu0 6
    %112 = vperm.xlu0 %111, %v46
    %v113 = vpop.permute.xlu0 %112
    %v115 = vmul.f32 %v110, %v113
    %v116 = vmin.f32 %v106, %v115
    %v117 = vlaneseq
    %v118 = vshrl.u32 %v117, 7
    %v119 = vsub.s32 7, %v118
    %v120 = vrot.slane %v44, %v119
    %121 = vset.pattern.permute.xlu0 7
    %122 = vperm.xlu0 %121, %v46
    %v123 = vpop.permute.xlu0 %122
    %v125 = vmul.f32 %v120, %v123
    %v126 = vmin.f32 %v116, %v125
    %s127 = smul.u32 0, 128
    %v128 = vlaneseq
    %v129 = vand.u32 %v128, 127
    %v130 = vstv %s127
    %v131 = vadd.s32 %v130, %v129
    %vm132 = vcmp.lt.s32.totalorder %v131, 16
    %v133 = vsel %vm132, %v126, 0.0
    %v134 = vld [vmem:[#allocation2] sm:$0xff]
    %135 = vadd.xlane.f32.xlu0 %v133
    %v136 = vpop.xlane.xlu0 %135
    %v137 = vadd.f32 %v134, %v136
    %vm138 = vcmask 7168
    %139 = vst.msk [vmem:[#allocation2] sm:$0xff] %vm138, %v137
    // Predicated region
    $region22: #{tpu_custom_call.1} parent=1 // pred_check
      %p140 = pneg %p35
    $region23: #{tpu_custom_call.1} parent=1 // pred_check_branch
      %142 = sbr.rel (%p140) target = $region25
    $region24: #{tpu_custom_call.1} parent=1 // pred_region
      %v143 = vld [vmem:[#allocation2] sm:$0xff]
      %v144 = vrcp.pop %v143
      %v145 = vmul.f32 10.065208, %v144
      %146 = vst.msk [vmem:[%s2] sm:$0xff] %vm138, %v145
    $region25: #{tpu_custom_call.1} parent=1 // pred_fallthru
      _
    // Predicated region
    $region26: #{tpu_custom_call.1} parent=1 // pred_check
      _
    $region27: #{tpu_custom_call.1} parent=1 // pred_check_branch
      %148 = sbr.rel (0) target = $region29
    $region28: #{tpu_custom_call.1} parent=1 // pred_region
      _
    $region29: #{tpu_custom_call.1} parent=1 // pred_fallthru
      _
    // Predicated region
    $region30: #{tpu_custom_call.1} parent=1 // pred_check
      _
    $region31: #{tpu_custom_call.1} parent=1 // pred_check_branch
      %150 = sbr.rel (0) target = $region33
    $region32: #{tpu_custom_call.1} parent=1 // pred_region
      _
    $region33: #{tpu_custom_call.1} parent=1 // pred_fallthru
      _
    %151 = vsyncpa [#allocation4], 1
    %152 = vsyncpa [#allocation6], 1

</llo_original>
